<compile_context>
chip_gen: v7x
topology: tpu7x:2x2x1
jax: 0.10.0
libtpu: 0.0.40
codegen_flags: <defaults>
</compile_context>

<pallas_src>
import functools
import math

import jax
import jax.numpy as jnp
from jax import lax
from jax.experimental import pallas as pl
from jax.experimental.pallas import tpu as pltpu


def _cdiv(a, b):
    return -(-a // b)


def _round_up(a, m):
    return _cdiv(a, m) * m


def _tpu_vmem_bytes():
    """Per-core VMEM capacity; conservative 64 MiB fallback (v7x-sized)."""
    try:
        info = pltpu.get_tpu_info()
        cap = getattr(info, "vmem_capacity_bytes", None)
        if cap:
            return int(cap)
    except Exception:
        pass
    return 64 * 1024 * 1024


def _choose_tiling(n_rows, width, in_dtype, out_dtype, row_tile=None):
    """Pick (block_rows, grid_rows, vmem_limit_bytes) for an (n_rows, width) slab."""
    in_b = jnp.dtype(in_dtype).itemsize
    out_b = jnp.dtype(out_dtype).itemsize
    # Native sublane packing: 8 rows/vreg at 32-bit, 16 at 16-bit, 32 at 8-bit.
    pack = 8 * (4 // min(in_b, out_b, 4))
    vmem_cap = _tpu_vmem_bytes()
    small_vmem = vmem_cap <= (64 << 20)            # v7x: 64 MiB per TensorCore
    # Byte-targeted input block to amortize per-step overhead; v7x gets a
    # larger target because its HBM is ~2.3x faster.
    input_target = (8 << 20) if small_vmem else (4 << 20)
    # Working set per row: double-buffered in/out blocks + 4 block-sized f32
    # temporaries (x_f32, d, d*d, y) at peak.
    per_row = width * (2 * in_b + 2 * out_b + 4 * 4)
    vmem_ceiling = (48 << 20) if small_vmem else (96 << 20)
    budget = vmem_ceiling - (8 << 20)

    if row_tile is not None:
        tile = max(pack, (int(row_tile) // pack) * pack)
    else:
        tile = min(input_target // max(width * in_b, 1),
                   budget // max(per_row, 1))
        tile = max(pack, (tile // pack) * pack)

    if n_rows <= tile:
        if n_rows >= 2 * pack:
            # Split into >=2 blocks so both v7x TensorCores get work
            # (harmless on single-TC v5e/v6e: one extra cheap grid step).
            tile = _round_up(_cdiv(n_rows, 2), pack)
        else:
            tile = n_rows  # full-extent block: always layout-legal
    grid_rows = _cdiv(n_rows, tile)
    # Prefer an even number of grid steps so the "parallel" axis shards evenly
    # across v7x's two TensorCores (no effect on single-TC chips).
    if (row_tile is None and grid_rows > 1 and grid_rows % 2 == 1
            and n_rows >= 2 * pack):
        tile = max(pack, _round_up(_cdiv(n_rows, grid_rows + 1), pack))
        grid_rows = _cdiv(n_rows, tile)

    vmem_limit = tile * per_row + (8 << 20)
    vmem_limit = int(max(32 << 20, min(vmem_limit, vmem_ceiling)))
    return tile, grid_rows, vmem_limit


def _layernorm_kernel(x_ref, w_ref, b_ref, o_ref, *, eps, affine):
    # Reduce in f32 (matches the do_cast=True path; strictly better than
    # low-precision accumulation when do_cast=False).
    x = x_ref[...].astype(jnp.float32)
    mean = jnp.mean(x, axis=-1, keepdims=True)
    d = x - mean
    var = jnp.mean(d * d, axis=-1, keepdims=True)
    y = d * lax.rsqrt(var + eps)
    if affine:
        y = y * w_ref[...].astype(jnp.float32) + b_ref[...].astype(jnp.float32)
    o_ref[...] = y.astype(o_ref.dtype)


def _layernorm_folded_kernel(x_ref, a_ref, w_ref, b_ref, o_ref, *, eps, affine,
                             inv_dim, mm_precision):
    # `fold` logical rows share one lane-dense physical row.  A is a
    # (width, width) block-diagonal 0/1 SUM matrix: A[i, j] = 1 iff
    # i // dim == j // dim.  x @ A yields each segment's sum broadcast back
    # across its segment; the 1/dim scaling (exact: dim | 128) is done on the
    # VPU so the matmul dtype stays narrow and exact.
    x = x_ref[...].astype(jnp.float32)
    a = a_ref[...]
    xs = x_ref[...].astype(a.dtype)
    mean = jnp.dot(xs, a, preferred_element_type=jnp.float32,
                   precision=mm_precision) * inv_dim
    d = x - mean
    ds = (d * d).astype(a.dtype)
    var = jnp.dot(ds, a, preferred_element_type=jnp.float32,
                  precision=mm_precision) * inv_dim
    y = d * lax.rsqrt(var + eps)
    if affine:
        y = y * w_ref[...].astype(jnp.float32) + b_ref[...].astype(jnp.float32)
    o_ref[...] = y.astype(o_ref.dtype)


def pallas_layernorm(x, weight, bias, *, eps=1e-8, do_cast=True, affine=True,
                     row_tile=None):
    # Stats always accumulate in f32 (>= the accuracy of either do_cast
    # setting); output dtype equals input dtype, matching the PyTorch module.
    del do_cast
    orig_shape = x.shape
    orig_dtype = x.dtype
    dim = orig_shape[-1]
    rows = math.prod(orig_shape[:-1])

    # Lane-dense fold for small dims: pack fold = 128 // dim logical rows per
    # 128-wide physical row.  Pad rows up to a multiple of fold if needed
    # (one cheap pad copy beats masked width<128 stores).
    fold, pad_rows = 1, 0
    if dim < 128 and 128 % dim == 0 and (128 // dim) > 1:
        fold = 128 // dim
        pad_rows = (-rows) % fold
    n_rows = (rows + pad_rows) // fold
    width = dim * fold

    x2 = x.reshape(rows, dim)
    if pad_rows:
        x2 = jnp.pad(x2, ((0, pad_rows), (0, 0)))
    x2 = x2.reshape(n_rows, width)
    w2 = (jnp.tile(weight, fold) if fold > 1 else weight).reshape(1, width)
    b2 = (jnp.tile(bias, fold) if fold > 1 else bias).reshape(1, width)

    block_rows, grid_rows, vmem_limit = _choose_tiling(
        n_rows, width, x2.dtype, orig_dtype, row_tile=row_tile)

    # TODO(synk): if a v7x profile shows exposed input DMA at the larger
    # blocks, add pipeline_mode=pl.Buffered(3) on the input row_spec only.
    row_spec = pl.BlockSpec((block_rows, width), lambda i: (i, 0))
    vec_spec = pl.BlockSpec((1, width), lambda i: (0, 0))

    in_b = jnp.dtype(x2.dtype).itemsize
    out_b = jnp.dtype(orig_dtype).itemsize
    flops = 8 * rows * dim
    param_bytes = 2 * width * jnp.dtype(w2.dtype).itemsize

    operands = [x2]
    if fold > 1:
        # bf16 0/1 sum matrix (1 MXU pass) for <=16-bit inputs; f32 with
        # explicit HIGHEST precision for f32 inputs (no silent truncation).
        mm_dtype = jnp.bfloat16 if in_b <= 2 else jnp.float32
        mm_precision = (lax.Precision.HIGHEST
                        if mm_dtype is jnp.float32 else None)
        seg = jnp.arange(width, dtype=jnp.int32) // dim
        a_mat = (seg[:, None] == seg[None, :]).astype(mm_dtype)
        operands.append(a_mat)
        in_specs = [row_spec,
                    pl.BlockSpec((width, width), lambda i: (0, 0)),
                    vec_spec, vec_spec]
        kernel = functools.partial(_layernorm_folded_kernel, eps=eps,
                                   affine=affine, inv_dim=float(1.0 / dim),
                                   mm_precision=mm_precision)
        flops += 2 * (2 * n_rows * width * width)
        param_bytes += width * width * jnp.dtype(mm_dtype).itemsize
    else:
        in_specs = [row_spec, vec_spec, vec_spec]
        kernel = functools.partial(_layernorm_kernel, eps=eps, affine=affine)
    operands += [w2, b2]

    cost = pl.CostEstimate(
        flops=int(flops),
        transcendentals=int(rows),
        bytes_accessed=int(rows * dim * (in_b + out_b) + param_bytes),
    )

    out = pl.pallas_call(
        kernel,
        out_shape=jax.ShapeDtypeStruct((n_rows, width), orig_dtype),
        grid_spec=pltpu.PrefetchScalarGridSpec(
            num_scalar_prefetch=0,
            grid=(grid_rows,),
            in_specs=in_specs,
            out_specs=pl.BlockSpec((block_rows, width), lambda i: (i, 0)),
        ),
        compiler_params=pltpu.CompilerParams(
            dimension_semantics=("parallel",),
            vmem_limit_bytes=int(vmem_limit),
        ),
        cost_estimate=cost,
    )(*operands)

    out = out.reshape(rows + pad_rows, dim)
    if pad_rows:
        out = out[:rows]
    return out.reshape(orig_shape)


def reference_layernorm(x, weight, bias, *, eps=1e-8, do_cast=True, affine=True):
    orig_dtype = x.dtype
    xf = x.astype(jnp.float32) if do_cast else x
    mean = jnp.mean(xf, axis=-1, keepdims=True)
    var = jnp.mean((xf - mean) ** 2, axis=-1, keepdims=True)
    y = (xf - mean) * lax.rsqrt(var + eps)
    if affine:
        y = y * weight + bias
    return y.astype(orig_dtype)


if __name__ == "__main__":
    key = jax.random.PRNGKey(0)
    k1, k2, k3 = jax.random.split(key, 3)

    # Case 1: small hidden dim (lane-dense fold, bf16 1-pass MXU sum-matrix),
    # bf16 I/O with f32 accumulation.
    batch, seq, hidden = 2, 8, 32
    x1 = jax.random.normal(k1, (batch, seq, hidden), dtype=jnp.float32)
    x1 = x1.astype(jnp.bfloat16)
    w1 = jnp.ones((hidden,), dtype=jnp.float32)    # nn.Parameter(torch.ones(dim))
    b1 = jnp.zeros((hidden,), dtype=jnp.float32)   # nn.Parameter(torch.zeros(dim))
    out1 = jax.block_until_ready(
        pallas_layernorm(x1, w1, b1, eps=1e-8, do_cast=True, affine=True))
    ref1 = reference_layernorm(x1, w1, b1, eps=1e-8, do_cast=True, affine=True)
    assert out1.shape == x1.shape and out1.dtype == x1.dtype
    assert jnp.allclose(out1.astype(jnp.float32), ref1.astype(jnp.float32),
                        atol=1e-2, rtol=1e-2)

    # Case 2: lane-dense hidden dim (>= 128) -> direct row-reduction path,
    # f32, even multi-step "parallel" grid.
    hidden2 = 256
    x2 = jax.random.normal(k2, (batch, seq, hidden2), dtype=jnp.float32)
    w2 = jnp.ones((hidden2,), dtype=jnp.float32) * 1.1
    b2 = jnp.full((hidden2,), 0.05, dtype=jnp.float32)
    out2 = jax.block_until_ready(
        pallas_layernorm(x2, w2, b2, eps=1e-8, do_cast=True, affine=True))
    ref2 = reference_layernorm(x2, w2, b2, eps=1e-8, do_cast=True, affine=True)
    assert out2.shape == x2.shape and out2.dtype == x2.dtype
    assert jnp.allclose(out2, ref2, atol=1e-4, rtol=1e-4)

    # Case 3: small dim, f32 input, rows NOT divisible by the fold (15 rows,
    # fold=4) -> exercises the row-padded fold path + HIGHEST-precision matmul.
    x3 = jax.random.normal(k3, (3, 5, hidden), dtype=jnp.float32)
    w3 = jnp.ones((hidden,), dtype=jnp.float32) * 0.9
    b3 = jnp.full((hidden,), -0.1, dtype=jnp.float32)
    out3 = jax.block_until_ready(
        pallas_layernorm(x3, w3, b3, eps=1e-8, do_cast=True, affine=True))
    ref3 = reference_layernorm(x3, w3, b3, eps=1e-8, do_cast=True, affine=True)
    assert out3.shape == x3.shape and out3.dtype == x3.dtype
    assert jnp.allclose(out3, ref3, atol=1e-4, rtol=1e-4)

    print("KERNEL_OK")
</pallas_src>

<mosaic_0001>
module attributes {stable_mosaic.version = 11 : i64} {
  func.func @_layernorm_folded_kernel(%arg0: i32, %arg1: memref<4x128xbf16, #tpu.memory_space<vmem>>, %arg2: memref<128x128xbf16, #tpu.memory_space<vmem>>, %arg3: memref<1x128xf32, #tpu.memory_space<vmem>>, %arg4: memref<1x128xf32, #tpu.memory_space<vmem>>, %arg5: memref<4x128xbf16, #tpu.memory_space<vmem>>) attributes {dimension_semantics = [#tpu.dimension_semantics<parallel>], iteration_bounds = array<i64: 1>, scalar_prefetch = 0 : i64, scratch_operands = 0 : i64, tpu.core_type = #tpu.core_type<tc>, window_params = [{transform_indices = @transform_0, window_bounds = array<i64: 4, 128>}, {pipeline_mode = #tpu.pipeline_mode<synchronous>, transform_indices = @transform_1, window_bounds = array<i64: 128, 128>}, {pipeline_mode = #tpu.pipeline_mode<synchronous>, transform_indices = @transform_2, window_bounds = array<i64: 1, 128>}, {pipeline_mode = #tpu.pipeline_mode<synchronous>, transform_indices = @transform_3, window_bounds = array<i64: 1, 128>}, {transform_indices = @transform_4, window_bounds = array<i64: 4, 128>}]} {
    %c0 = arith.constant 0 : index
    %c0_0 = arith.constant 0 : index
    %0 = vector.load %arg1[%c0, %c0_0] : memref<4x128xbf16, #tpu.memory_space<vmem>>, vector<4x128xbf16>
    %1 = arith.extf %0 : vector<4x128xbf16> to vector<4x128xf32>
    %c0_1 = arith.constant 0 : index
    %c0_2 = arith.constant 0 : index
    %2 = vector.load %arg2[%c0_1, %c0_2] : memref<128x128xbf16, #tpu.memory_space<vmem>>, vector<128x128xbf16>
    %c0_3 = arith.constant 0 : index
    %c0_4 = arith.constant 0 : index
    %3 = vector.load %arg1[%c0_3, %c0_4] : memref<4x128xbf16, #tpu.memory_space<vmem>>, vector<4x128xbf16>
    %cst = arith.constant dense<0.000000e+00> : vector<4x128xf32>
    %4 = tpu.matmul %3, %2, %cst {dimension_numbers = #tpu.dot_dimension_numbers<[1], [0], [0], [1], [0, 0, 1, 1], [], []>} : vector<4x128xbf16>, vector<128x128xbf16>, vector<4x128xf32> -> vector<4x128xf32>
    %cst_5 = arith.constant 3.125000e-02 : f32
    %5 = vector.broadcast %cst_5 : f32 to vector<4x128xf32>
    %6 = arith.mulf %4, %5 : vector<4x128xf32>
    %7 = arith.subf %1, %6 : vector<4x128xf32>
    %8 = arith.mulf %7, %7 : vector<4x128xf32>
    %9 = arith.truncf %8 : vector<4x128xf32> to vector<4x128xbf16>
    %cst_6 = arith.constant dense<0.000000e+00> : vector<4x128xf32>
    %10 = tpu.matmul %9, %2, %cst_6 {dimension_numbers = #tpu.dot_dimension_numbers<[1], [0], [0], [1], [0, 0, 1, 1], [], []>} : vector<4x128xbf16>, vector<128x128xbf16>, vector<4x128xf32> -> vector<4x128xf32>
    %cst_7 = arith.constant 3.125000e-02 : f32
    %11 = vector.broadcast %cst_7 : f32 to vector<4x128xf32>
    %12 = arith.mulf %10, %11 : vector<4x128xf32>
    %cst_8 = arith.constant 9.99999993E-9 : f32
    %13 = vector.broadcast %cst_8 : f32 to vector<4x128xf32>
    %14 = arith.addf %12, %13 : vector<4x128xf32>
    %15 = math.rsqrt %14 : vector<4x128xf32>
    %16 = arith.mulf %7, %15 : vector<4x128xf32>
    %c0_9 = arith.constant 0 : index
    %c0_10 = arith.constant 0 : index
    %17 = vector.load %arg3[%c0_9, %c0_10] : memref<1x128xf32, #tpu.memory_space<vmem>>, vector<1x128xf32>
    %18 = vector.broadcast %17 : vector<1x128xf32> to vector<4x128xf32>
    %19 = arith.mulf %16, %18 : vector<4x128xf32>
    %c0_11 = arith.constant 0 : index
    %c0_12 = arith.constant 0 : index
    %20 = vector.load %arg4[%c0_11, %c0_12] : memref<1x128xf32, #tpu.memory_space<vmem>>, vector<1x128xf32>
    %21 = vector.broadcast %20 : vector<1x128xf32> to vector<4x128xf32>
    %22 = arith.addf %19, %21 : vector<4x128xf32>
    %23 = arith.truncf %22 : vector<4x128xf32> to vector<4x128xbf16>
    %c0_13 = arith.constant 0 : index
    %c0_14 = arith.constant 0 : index
    %24 = vector.load %arg5[%c0_13, %c0_14] : memref<4x128xbf16, #tpu.memory_space<vmem>>, vector<4x128xbf16>
    tpu.vector_store %arg5[%c0_13, %c0_14], %23 {strides = array<i32>} : memref<4x128xbf16, #tpu.memory_space<vmem>>, vector<4x128xbf16>,
    return
  }
  func.func @transform_0(%arg0: i32) -> (i32, i32) {
    %c0_i32 = arith.constant 0 : i32
    %c0_i32_0 = arith.constant 0 : i32
    return %arg0, %c0_i32 : i32, i32
  }
  func.func @transform_1(%arg0: i32) -> (i32, i32) {
    %c0_i32 = arith.constant 0 : i32
    %c0_i32_0 = arith.constant 0 : i32
    %c0_i32_1 = arith.constant 0 : i32
    return %c0_i32, %c0_i32_0 : i32, i32
  }
  func.func @transform_2(%arg0: i32) -> (i32, i32) {
    %c0_i32 = arith.constant 0 : i32
    %c0_i32_0 = arith.constant 0 : i32
    %c0_i32_1 = arith.constant 0 : i32
    return %c0_i32, %c0_i32_0 : i32, i32
  }
  func.func @transform_3(%arg0: i32) -> (i32, i32) {
    %c0_i32 = arith.constant 0 : i32
    %c0_i32_0 = arith.constant 0 : i32
    %c0_i32_1 = arith.constant 0 : i32
    return %c0_i32, %c0_i32_0 : i32, i32
  }
  func.func @transform_4(%arg0: i32) -> (i32, i32) {
    %c0_i32 = arith.constant 0 : i32
    %c0_i32_0 = arith.constant 0 : i32
    return %arg0, %c0_i32 : i32, i32
  }
}

</mosaic_0001>

<llo_original>
// kernel: tpu_custom_call.1
$region0: #{tpu_custom_call.1}
  #allocation0 [shape = 'u32[]', space=smem, size = 0x4, offset = 0x4, fixed_abs, tag = 'smem constant byte address 0x4 - core index']
  #allocation1 [shape = 'u32[144,128]{1,0:T(1,128)}', space=vmem, size = 0x12000, scoped, tag = 'internal scratch']
  %s0 = inlined_call_operand.hbm [shape: bf16[4,128], index: 0, kind: input, shape index: {}]
  %s1 = inlined_call_operand.hbm [shape: bf16[128,128], index: 1, kind: input, shape index: {}]
  %s2 = inlined_call_operand.vmem [shape: f32[1,128], index: 2, kind: input, shape index: {}]
  %s3 = inlined_call_operand.vmem [shape: f32[1,128], index: 3, kind: input, shape index: {}]
  %s4 = inlined_call_operand.hbm [shape: bf16[4,128], index: 4, kind: output, shape index: {}]
  %s5 = sld [smem:[#allocation0]]
  $region34: #{tpu_custom_call.1} parent=0
    _
  %s7 = ssub.s32 1, %s5
  %s8 = scalar_select 0, %s7, %s5
  $region1: #{tpu_custom_call.1} parent=0
    #allocation2 [shape = 'u8[1024]{0}', space=vmem, size = 0x400, scoped, tag = 'input window, operand 0, single buffered']
    #allocation3 [shape = 's32[1]{0}', space=sflag, size = 0x4, scoped, tag = 'scoped memory for tpu_custom_call.1']
    #allocation4 [shape = 's32[1]{0}', space=sflag, size = 0x4, scoped, tag = 'scoped memory for tpu_custom_call.1']
    #allocation5 [shape = 'u8[32768]{0}', space=vmem, size = 0x8000, scoped, tag = 'input window, operand 1, single buffered']
    #allocation6 [shape = 's32[1]{0}', space=sflag, size = 0x4, scoped, tag = 'scoped memory for tpu_custom_call.1']
    #allocation7 [shape = 'u8[1024]{0}', space=vmem, size = 0x400, scoped, tag = 'output window, operand 0, single buffered']
    %9 = vsyncpa [#allocation3], 0
    %10 = vsyncpa [#allocation6], 0
    %11 = vsyncpa [#allocation4], 0
    // Predicated region
    $region2: #{tpu_custom_call.1} parent=1 // pred_check
      _
    $region3: #{tpu_custom_call.1} parent=1 // pred_check_branch
      %13 = sbr.rel (0) target = $region5
    $region4: #{tpu_custom_call.1} parent=1 // pred_region
      %s15 = ssub.s32 32, 32
      %16 = vsyncadd [#allocation3], %s15
      %s18 = sshll.u32 [#allocation2], 4
      %s19 = int_to_ptr.vmem [resolvable:$true] %s18
      %21 = dma.hbm_to_vmem [thread:$0]  %s0, 32, %s19, [#allocation3]
    $region5: #{tpu_custom_call.1} parent=1 // pred_fallthru
      _
    // Predicated region
    $region6: #{tpu_custom_call.1} parent=1 // pred_check
      _
    $region7: #{tpu_custom_call.1} parent=1 // pred_check_branch
      %23 = sbr.rel (0) target = $region9
    $region8: #{tpu_custom_call.1} parent=1 // pred_region
      %s25 = ssub.s32 1024, 1024
      %26 = vsyncadd [#allocation6], %s25
      %s27 = sshll.u32 [#allocation5], 4
      %s28 = int_to_ptr.vmem [resolvable:$true] %s27
      %33 = dma.hbm_to_vmem [thread:$0]  %s1, 1024, %s28, [#allocation6], 64, 64, 4
    $region9: #{tpu_custom_call.1} parent=1 // pred_fallthru
      _
    // Predicated region
    $region10: #{tpu_custom_call.1} parent=1 // pred_check
      _
    $region11: #{tpu_custom_call.1} parent=1 // pred_check_branch
      %35 = sbr.rel (0) target = $region13
    $region12: #{tpu_custom_call.1} parent=1 // pred_region
      _
    $region13: #{tpu_custom_call.1} parent=1 // pred_fallthru
      _
    // Predicated region
    $region14: #{tpu_custom_call.1} parent=1 // pred_check
      _
    $region15: #{tpu_custom_call.1} parent=1 // pred_check_branch
      %37 = sbr.rel (0) target = $region17
    $region16: #{tpu_custom_call.1} parent=1 // pred_region
      _
    $region17: #{tpu_custom_call.1} parent=1 // pred_fallthru
      _
    // Predicated region
    $region18: #{tpu_custom_call.1} parent=1 // pred_check
      _
    $region19: #{tpu_custom_call.1} parent=1 // pred_check_branch
      %39 = sbr.rel (0) target = $region21
    $region20: #{tpu_custom_call.1} parent=1 // pred_region
      %40 = dma.done [#allocation3], 32
    $region21: #{tpu_custom_call.1} parent=1 // pred_fallthru
      _
    // Predicated region
    $region22: #{tpu_custom_call.1} parent=1 // pred_check
      _
    $region23: #{tpu_custom_call.1} parent=1 // pred_check_branch
      %42 = sbr.rel (0) target = $region25
    $region24: #{tpu_custom_call.1} parent=1 // pred_region
      %43 = dma.done [#allocation6], 1024
    $region25: #{tpu_custom_call.1} parent=1 // pred_fallthru
      _
    %v45 = vld [vmem:[#allocation2] sm:$0x3]
    %v46 = vunpack.c.l.bf16 %v45
    %v47 = vld [vmem:[#allocation5] sm:$0xf]
    %v48 = vld [vmem:[#allocation5 + $0x4] sm:$0xf]
    %v49 = vld [vmem:[#allocation5 + $0x8] sm:$0xf]
    %v50 = vld [vmem:[#allocation5 + $0xc] sm:$0xf]
    %v51 = vld [vmem:[#allocation5 + $0x10] sm:$0xf]
    %v52 = vld [vmem:[#allocation5 + $0x14] sm:$0xf]
    %v53 = vld [vmem:[#allocation5 + $0x18] sm:$0xf]
    %v54 = vld [vmem:[#allocation5 + $0x1c] sm:$0xf]
    %v55 = vld [vmem:[#allocation5 + $0x20] sm:$0xf]
    %v56 = vld [vmem:[#allocation5 + $0x24] sm:$0xf]
    %v57 = vld [vmem:[#allocation5 + $0x28] sm:$0xf]
    %v58 = vld [vmem:[#allocation5 + $0x2c] sm:$0xf]
    %v59 = vld [vmem:[#allocation5 + $0x30] sm:$0xf]
    %v60 = vld [vmem:[#allocation5 + $0x34] sm:$0xf]
    %v61 = vld [vmem:[#allocation5 + $0x38] sm:$0xf]
    %v62 = vld [vmem:[#allocation5 + $0x3c] sm:$0xf]
    %v79 = vunpack.c.l.b16 %v47
    %v80 = vunpack.c.l.b16 %v48
    %v81 = vunpack.c.l.b16 %v49
    %v82 = vunpack.c.l.b16 %v50
    %v83 = vunpack.c.l.b16 %v51
    %v84 = vunpack.c.l.b16 %v52
    %v85 = vunpack.c.l.b16 %v53
    %v86 = vunpack.c.l.b16 %v54
    %v87 = vunpack.c.l.b16 %v55
    %v88 = vunpack.c.l.b16 %v56
    %v89 = vunpack.c.l.b16 %v57
    %v90 = vunpack.c.l.b16 %v58
    %v91 = vunpack.c.l.b16 %v59
    %v92 = vunpack.c.l.b16 %v60
    %v93 = vunpack.c.l.b16 %v61
    %v94 = vunpack.c.l.b16 %v62
    %v95 = vpack.c.b16 %v80, %v79
    %v96 = vpack.c.b16 %v82, %v81
    %v97 = vpack.c.b16 %v84, %v83
    %v98 = vpack.c.b16 %v86, %v85
    %v99 = vpack.c.b16 %v88, %v87
    %v100 = vpack.c.b16 %v90, %v89
    %v101 = vpack.c.b16 %v92, %v91
    %v102 = vpack.c.b16 %v94, %v93
    %111 = vmatprep.subr.bf16.mxu0 0
    %112 = vmatpush1.bf16.msra.mxu0 %v95
    %113 = vmatprep.subr.bf16.mxu0 0
    %114 = vmatpush1.bf16.msra.mxu0 %v96
    %115 = vmatprep.subr.bf16.mxu0 0
    %116 = vmatpush1.bf16.msra.mxu0 %v97
    %117 = vmatprep.subr.bf16.mxu0 0
    %118 = vmatpush1.bf16.msra.mxu0 %v98
    %119 = vmatprep.subr.bf16.mxu0 0
    %120 = vmatpush1.bf16.msra.mxu0 %v99
    %121 = vmatprep.subr.bf16.mxu0 0
    %122 = vmatpush1.bf16.msra.mxu0 %v100
    %123 = vmatprep.subr.bf16.mxu0 0
    %124 = vmatpush1.bf16.msra.mxu0 %v101
    %125 = vmatprep.subr.bf16.mxu0 0
    %126 = vmatpush1.bf16.msra.mxu0 %v102
    %127 = vmatprep.subr.bf16.mxu0 0
    %128 = vmatpush1.bf16.msra.mxu0 0
    %129 = vmatprep.subr.bf16.mxu0 0
    %130 = vmatpush1.bf16.msra.mxu0 0
    %131 = vmatprep.subr.bf16.mxu0 0
    %132 = vmatpush1.bf16.msra.mxu0 0
    %133 = vmatprep.subr.bf16.mxu0 0
    %134 = vmatpush1.bf16.msra.mxu0 0
    %135 = vmatprep.subr.bf16.mxu0 0
    %136 = vmatpush1.bf16.msra.mxu0 0
    %137 = vmatprep.subr.bf16.mxu0 0
    %138 = vmatpush1.bf16.msra.mxu0 0
    %139 = vmatprep.subr.bf16.mxu0 0
    %140 = vmatpush1.bf16.msra.mxu0 0
    %141 = vmatprep.subr.bf16.mxu0 0
    %142 = vmatpush1.bf16.msra.mxu0 0
    %143 = vmatprep.mubr.bf16.mxu0 0
    %144 = vmatmul.mubr.bf16.gmra.mrb[0].mxu0 %v45
    %v145 = vpop.f32.mrb[0].mxu0
    %v146 = vadd.f32 0.0, %v145
    %v147 = vpop.f32.mrb[0].mxu0
    %v148 = vpop.f32.mrb[0].mxu0
    %v149 = vpop.f32.mrb[0].mxu0
    %150 = vdwg.mxu0
    %v151 = vmul.f32 %v146, 0.03125
    %v152 = vsub.f32 %v46, %v151
    %v153 = vmul.f32 %v152, %v152
    %v154 = vpack.c.bf16 %v153, %v153
    %155 = vmatprep.subr.bf16.mxu0 0
    %156 = vmatpush1.bf16.msra.mxu0 %v95
    %157 = vmatprep.subr.bf16.mxu0 0
    %158 = vmatpush1.bf16.msra.mxu0 %v96
    %159 = vmatprep.subr.bf16.mxu0 0
    %160 = vmatpush1.bf16.msra.mxu0 %v97
    %161 = vmatprep.subr.bf16.mxu0 0
    %162 = vmatpush1.bf16.msra.mxu0 %v98
    %163 = vmatprep.subr.bf16.mxu0 0
    %164 = vmatpush1.bf16.msra.mxu0 %v99
    %165 = vmatprep.subr.bf16.mxu0 0
    %166 = vmatpush1.bf16.msra.mxu0 %v100
    %167 = vmatprep.subr.bf16.mxu0 0
    %168 = vmatpush1.bf16.msra.mxu0 %v101
    %169 = vmatprep.subr.bf16.mxu0 0
    %170 = vmatpush1.bf16.msra.mxu0 %v102
    %171 = vmatprep.subr.bf16.mxu0 0
    %172 = vmatpush1.bf16.msra.mxu0 0
    %173 = vmatprep.subr.bf16.mxu0 0
    %174 = vmatpush1.bf16.msra.mxu0 0
    %175 = vmatprep.subr.bf16.mxu0 0
    %176 = vmatpush1.bf16.msra.mxu0 0
    %177 = vmatprep.subr.bf16.mxu0 0
    %178 = vmatpush1.bf16.msra.mxu0 0
    %179 = vmatprep.subr.bf16.mxu0 0
    %180 = vmatpush1.bf16.msra.mxu0 0
    %181 = vmatprep.subr.bf16.mxu0 0
    %182 = vmatpush1.bf16.msra.mxu0 0
    %183 = vmatprep.subr.bf16.mxu0 0
    %184 = vmatpush1.bf16.msra.mxu0 0
    %185 = vmatprep.subr.bf16.mxu0 0
    %186 = vmatpush1.bf16.msra.mxu0 0
    %187 = vmatprep.mubr.bf16.mxu0 0
    %188 = vmatmul.mubr.bf16.gmra.mrb[0].mxu0 %v154
    %v189 = vpop.f32.mrb[0].mxu0
    %v190 = vadd.f32 0.0, %v189
    %v191 = vpop.f32.mrb[0].mxu0
    %v192 = vpop.f32.mrb[0].mxu0
    %v193 = vpop.f32.mrb[0].mxu0
    %194 = vdwg.mxu0
    %v195 = vmul.f32 %v190, 0.03125
    %v196 = vadd.f32 %v195, 1e-08
    %v197 = vrsqrt.pop %v196
    %v198 = vmul.f32 %v152, %v197
    %v199 = vld [vmem:[%s2] sm:$0x1]
    %v201 = vlaneseq
    %v202 = vshrl.u32 %v201, 7
    %v203 = vsub.s32 0, %v202
    %v204 = vrot.slane %v199, %v203
    %v206 = vmul.f32 %v198, %v204
    %v207 = vld [vmem:[%s3] sm:$0x1]
    %v209 = vlaneseq
    %v210 = vshrl.u32 %v209, 7
    %v211 = vsub.s32 0, %v210
    %v212 = vrot.slane %v207, %v211
    %v214 = vadd.f32 %v206, %v212
    %v215 = vpack.c.bf16 %v214, %v214
    %216 = vst [vmem:[#allocation7] sm:$0x3] %v215
    // Predicated region
    $region26: #{tpu_custom_call.1} parent=1 // pred_check
      _
    $region27: #{tpu_custom_call.1} parent=1 // pred_check_branch
      %218 = sbr.rel (0) target = $region29
    $region28: #{tpu_custom_call.1} parent=1 // pred_region
      %s220 = ssub.s32 32, 32
      %221 = vsyncadd [#allocation4], %s220
      %s223 = sshll.u32 [#allocation7], 4
      %s224 = int_to_ptr.vmem [resolvable:$true] %s223
      %226 = dma.vmem_to_hbm [thread:$0]  %s224, 32, %s4, [#allocation4]
    $region29: #{tpu_custom_call.1} parent=1 // pred_fallthru
      _
    // Predicated region
    $region30: #{tpu_custom_call.1} parent=1 // pred_check
      _
    $region31: #{tpu_custom_call.1} parent=1 // pred_check_branch
      %228 = sbr.rel (0) target = $region33
    $region32: #{tpu_custom_call.1} parent=1 // pred_region
      %229 = dma.done [#allocation4], 32
    $region33: #{tpu_custom_call.1} parent=1 // pred_fallthru
      _
    %230 = vsyncpa [#allocation3], 1
    %231 = vsyncpa [#allocation6], 1
    %232 = vsyncpa [#allocation4], 1

</llo_original>
